<compile_context>
chip_gen: v5e
topology: v5e:2x2
jax: 0.10.0
libtpu: 0.0.40
codegen_flags: <defaults>
</compile_context>

<pallas_src>
import functools

import jax
import jax.numpy as jnp
from jax import lax
from jax.experimental import pallas as pl
from jax.experimental.pallas import tpu as pltpu

LANES = 128
CHUNK_ROWS = 256          # rows per inner chunk (bounds vreg live range)
TILE_BYTES = 1 << 20      # ~1 MiB input tiles (≈85%+ of HBM streaming roofline)


def _num_tc_splits():
    """2 on multi-TensorCore chips (v7x family), else 1 (v5e/v6e single TC)."""
    try:
        kind = jax.devices()[0].device_kind.lower()
    except Exception:
        return 1
    return 2 if ("v7" in kind or "7x" in kind) else 1


def _penalty_kernel(k_ref, x_ref, o_ref, *, total_rows, chunk, acc_rows):
    # k_ref : (1,) f32 in SMEM (scalar prefetch); holds 0.5*k pre-folded.
    # x_ref : (tm, 128) tile in VMEM (native dtype).
    # o_ref : (acc_rows, 128) f32 accumulator block, resident across axis 1.
    c = pl.program_id(0)                       # TensorCore split
    i = pl.program_id(1)                       # tile index within this split
    tm = x_ref.shape[0]
    n_chunks = tm // chunk

    @pl.when(i == 0)
    def _():
        o_ref[...] = jnp.zeros_like(o_ref)

    kh = k_ref[0]
    row0 = (c * pl.num_programs(1) + i) * tm   # raw (unclamped) start row of tile
    is_full = row0 + tm <= total_rows          # interior tile -> unmasked fast path
    is_live = row0 < total_rows                # False only for clamped duplicates

    def fold(val):
        # VPU-only sublane fold into the (acc_rows, 128) accumulator.
        return val.reshape(chunk // acc_rows, acc_rows, LANES).sum(axis=0)

    @pl.when(is_full)
    def _():
        # Fast path (vast majority of tiles): no masking at all.
        def body(j, carry):
            start = pl.multiple_of(j * chunk, chunk)
            x = x_ref[pl.ds(start, chunk), :].astype(jnp.float32)
            # 2/(1+exp(-k|x|)) - 1 == tanh(0.5*k*|x|): one EUP op per element.
            o_ref[...] += fold(jnp.tanh(kh * jnp.abs(x)))
            return carry
        lax.fori_loop(0, n_chunks, body, 0, unroll=True)

    @pl.when(jnp.logical_and(jnp.logical_not(is_full), is_live))
    def _():
        # Only the final partial tile takes this (masked) path: rows past the
        # array are Pallas-undefined garbage and must not be accumulated.
        def body(j, carry):
            start = pl.multiple_of(j * chunk, chunk)
            x = x_ref[pl.ds(start, chunk), :].astype(jnp.float32)
            val = jnp.tanh(kh * jnp.abs(x))
            local = jax.lax.broadcasted_iota(jnp.int32, (chunk, LANES), 0)
            val = jnp.where(row0 + start + local < total_rows, val, 0.0)
            o_ref[...] += fold(val)
            return carry
        lax.fori_loop(0, n_chunks, body, 0, unroll=True)


def penalty(x, k=1):
    """sum(2/(1+exp(-k*|x|)) - 1) over all elements of x (Penalty.forward)."""
    x_flat = jnp.ravel(x)
    n = x_flat.shape[0]
    itemsize = jnp.dtype(x_flat.dtype).itemsize
    sub = 8 * max(1, 4 // itemsize)            # min sublane multiple for dtype

    k_half = jnp.float32(0.5 * float(k))       # pre-fold the 0.5 factor

    rows = (n // (sub * LANES)) * sub          # kernel rows: multiple of `sub`
    n_main = rows * LANES

    # Remainder (< sub*128 elements): tiny jnp epilogue -- no full-array pad/copy.
    tail = jnp.float32(0.0)
    if n_main < n:
        xt = x_flat[n_main:].astype(jnp.float32)
        tail = jnp.sum(jnp.tanh(k_half * jnp.abs(xt)))

    if rows == 0:
        return tail

    x2d = x_flat[:n_main].reshape(rows, LANES)

    # ---- tiling -------------------------------------------------------------
    chunk = CHUNK_ROWS if rows >= CHUNK_ROWS else rows          # multiple of sub
    acc_rows = 32 if chunk % 32 == 0 else sub                   # accumulator height
    budget_rows = max(chunk, (TILE_BYTES // (LANES * itemsize)) // chunk * chunk)
    tm = max(chunk, (min(budget_rows, rows) // chunk) * chunk)  # mult of chunk, <= rows
    n_blocks = pl.cdiv(rows, tm)

    splits = _num_tc_splits() if n_blocks >= 2 else 1
    tiles_per_split = pl.cdiv(n_blocks, splits)

    def x_index(c, i, k_ref):
        # Clamp so over-provisioned grid steps never index past the array;
        # their accumulation is skipped inside the kernel (row0 >= total_rows).
        return (jnp.minimum(c * tiles_per_split + i, n_blocks - 1), 0)

    def o_index(c, i, k_ref):
        return (c, 0)            # one private accumulator block per TC split

    kernel = functools.partial(_penalty_kernel, total_rows=rows,
                               chunk=chunk, acc_rows=acc_rows)

    partials = pl.pallas_call(
        kernel,
        out_shape=jax.ShapeDtypeStruct((splits * acc_rows, LANES), jnp.float32),
        grid_spec=pltpu.PrefetchScalarGridSpec(
            num_scalar_prefetch=1,
            grid=(splits, tiles_per_split),
            # TODO(synk): sweep pipeline_mode=pl.Buffered(3) on v7x hardware.
            in_specs=[pl.BlockSpec((tm, LANES), x_index)],
            out_specs=pl.BlockSpec((acc_rows, LANES), o_index),
        ),
        compiler_params=pltpu.CompilerParams(
            dimension_semantics=("parallel", "arbitrary"),
        ),
        cost_estimate=pl.CostEstimate(
            flops=int(4 * n),
            transcendentals=int(n),
            bytes_accessed=int(n * itemsize + splits * acc_rows * LANES * 4),
        ),
    )(jnp.asarray([k_half], dtype=jnp.float32), x2d)

    # Final tiny cross-lane reduce (splits*acc_rows*128 f32) done by XLA.
    return jnp.sum(partials) + tail


def penalty_ref(x, k=1):
    xf = x.astype(jnp.float32)
    return jnp.sum(2.0 / (1.0 + jnp.exp(-k * jnp.abs(xf))) - 1.0)


if __name__ == "__main__":
    key = jax.random.PRNGKey(0)
    k = 2.0  # Penalty(k) then forward(x, k) overwrites self.k with the call arg

    # Small NCHW input (single full tile, fast path only).
    x1 = jax.random.normal(key, (2, 4, 16, 16), dtype=jnp.float32)
    r1 = jax.block_until_ready(penalty(x1, k))
    assert jnp.allclose(r1, penalty_ref(x1, k), rtol=1e-5, atol=1e-3), r1

    # Larger input exercising multi-tile grid, masked partial tile and tail epilogue.
    x2 = jax.random.normal(jax.random.PRNGKey(1), (2, 4, 72, 72), dtype=jnp.float32)
    r2 = jax.block_until_ready(penalty(x2, k))
    assert jnp.allclose(r2, penalty_ref(x2, k), rtol=1e-5, atol=1e-3), r2

    print("KERNEL_OK")
</pallas_src>

<mosaic_0001>
module attributes {stable_mosaic.version = 11 : i64} {
  func.func @_penalty_kernel(%arg0: i32, %arg1: i32, %arg2: memref<1xf32, #tpu.memory_space<smem>>, %arg3: memref<16x128xf32, #tpu.memory_space<vmem>>, %arg4: memref<8x128xf32, #tpu.memory_space<vmem>>) attributes {dimension_semantics = [#tpu.dimension_semantics<parallel>, #tpu.dimension_semantics<arbitrary>], iteration_bounds = array<i64: 1, 1>, scalar_prefetch = 1 : i64, scratch_operands = 0 : i64, tpu.core_type = #tpu.core_type<tc>, window_params = [{transform_indices = @transform_0, window_bounds = array<i64: 16, 128>}, {transform_indices = @transform_1, window_bounds = array<i64: 8, 128>}]} {
    %c0_i32 = arith.constant 0 : i32
    %0 = arith.cmpi eq, %arg1, %c0_i32 : i32
    %1 = arith.extui %0 : i1 to i32
    %c0_i32_0 = arith.constant 0 : i32
    %2 = arith.cmpi ne, %1, %c0_i32_0 : i32
    scf.if %2 {
      %cst = arith.constant 0.000000e+00 : f32
      %16 = vector.broadcast %cst : f32 to vector<8x128xf32>
      %c0_6 = arith.constant 0 : index
      %c0_7 = arith.constant 0 : index
      %17 = vector.load %arg4[%c0_6, %c0_7] : memref<8x128xf32, #tpu.memory_space<vmem>>, vector<8x128xf32>
      tpu.vector_store %arg4[%c0_6, %c0_7], %16 {strides = array<i32>} : memref<8x128xf32, #tpu.memory_space<vmem>>, vector<8x128xf32>,
    } else {
    }
    %c0 = arith.constant 0 : index
    %3 = memref.load %arg2[%c0] : memref<1xf32, #tpu.memory_space<smem>>
    %c1_i32 = arith.constant 1 : i32
    %4 = arith.muli %arg0, %c1_i32 : i32
    %5 = arith.addi %4, %arg1 : i32
    %c16_i32 = arith.constant 16 : i32
    %6 = arith.muli %5, %c16_i32 : i32
    %c16_i32_1 = arith.constant 16 : i32
    %7 = arith.addi %6, %c16_i32_1 : i32
    %c16_i32_2 = arith.constant 16 : i32
    %8 = arith.cmpi sle, %7, %c16_i32_2 : i32
    %c16_i32_3 = arith.constant 16 : i32
    %9 = arith.cmpi slt, %6, %c16_i32_3 : i32
    %10 = arith.extui %8 : i1 to i32
    %c0_i32_4 = arith.constant 0 : i32
    %11 = arith.cmpi ne, %10, %c0_i32_4 : i32
    scf.if %11 {
      %c0_i32_6 = arith.constant 0 : i32
      %c16_i32_7 = arith.constant 16 : i32
      %16 = arith.muli %c0_i32_6, %c16_i32_7 : i32
      %17 = tpu.assume_multiple %16, 16 : i32
      %18 = arith.index_cast %17 : i32 to index
      %c0_8 = arith.constant 0 : index
      %19 = vector.load %arg3[%18, %c0_8] : memref<16x128xf32, #tpu.memory_space<vmem>>, vector<16x128xf32>
      %c0_9 = arith.constant 0 : index
      %c0_10 = arith.constant 0 : index
      %20 = vector.load %arg4[%c0_9, %c0_10] : memref<8x128xf32, #tpu.memory_space<vmem>>, vector<8x128xf32>
      %21 = math.absf %19 : vector<16x128xf32>
      %22 = vector.broadcast %3 : f32 to vector<16x128xf32>
      %23 = arith.mulf %22, %21 : vector<16x128xf32>
      %24 = math.tanh %23 : vector<16x128xf32>
      %25 = vector.shape_cast %24 : vector<16x128xf32> to vector<2x8x128xf32>
      %cst = arith.constant dense<0.000000e+00> : vector<8x128xf32>
      %26 = vector.multi_reduction <add>, %25, %cst [0] : vector<2x8x128xf32> to vector<8x128xf32>
      %27 = arith.addf %20, %26 : vector<8x128xf32>
      %c0_11 = arith.constant 0 : index
      %c0_12 = arith.constant 0 : index
      %28 = vector.load %arg4[%c0_11, %c0_12] : memref<8x128xf32, #tpu.memory_space<vmem>>, vector<8x128xf32>
      tpu.vector_store %arg4[%c0_11, %c0_12], %27 {strides = array<i32>} : memref<8x128xf32, #tpu.memory_space<vmem>>, vector<8x128xf32>,
      %c1_i32_13 = arith.constant 1 : i32
    } else {
    }
    %true = arith.constant true
    %12 = arith.xori %8, %true : i1
    %13 = arith.andi %12, %9 : i1
    %14 = arith.extui %13 : i1 to i32
    %c0_i32_5 = arith.constant 0 : i32
    %15 = arith.cmpi ne, %14, %c0_i32_5 : i32
    scf.if %15 {
      %c0_i32_6 = arith.constant 0 : i32
      %c16_i32_7 = arith.constant 16 : i32
      %16 = arith.muli %c0_i32_6, %c16_i32_7 : i32
      %17 = tpu.assume_multiple %16, 16 : i32
      %18 = arith.index_cast %17 : i32 to index
      %c0_8 = arith.constant 0 : index
      %19 = vector.load %arg3[%18, %c0_8] : memref<16x128xf32, #tpu.memory_space<vmem>>, vector<16x128xf32>
      %20 = math.absf %19 : vector<16x128xf32>
      %21 = vector.broadcast %3 : f32 to vector<16x128xf32>
      %22 = arith.mulf %21, %20 : vector<16x128xf32>
      %23 = math.tanh %22 : vector<16x128xf32>
      %24 = tpu.iota {dimensions = array<i32: 0>} : vector<16x128xi32>
      %25 = arith.addi %6, %17 : i32
      %26 = vector.broadcast %25 : i32 to vector<16x128xi32>
      %27 = arith.addi %26, %24 : vector<16x128xi32>
      %c16_i32_9 = arith.constant 16 : i32
      %28 = vector.broadcast %c16_i32_9 : i32 to vector<16x128xi32>
      %29 = arith.cmpi slt, %27, %28 : vector<16x128xi32>
      %cst = arith.constant 0.000000e+00 : f32
      %30 = vector.broadcast %cst : f32 to vector<16x128xf32>
      %31 = arith.select %29, %23, %30 : vector<16x128xi1>, vector<16x128xf32>
      %c0_10 = arith.constant 0 : index
      %c0_11 = arith.constant 0 : index
      %32 = vector.load %arg4[%c0_10, %c0_11] : memref<8x128xf32, #tpu.memory_space<vmem>>, vector<8x128xf32>
      %33 = vector.shape_cast %31 : vector<16x128xf32> to vector<2x8x128xf32>
      %cst_12 = arith.constant dense<0.000000e+00> : vector<8x128xf32>
      %34 = vector.multi_reduction <add>, %33, %cst_12 [0] : vector<2x8x128xf32> to vector<8x128xf32>
      %35 = arith.addf %32, %34 : vector<8x128xf32>
      %c0_13 = arith.constant 0 : index
      %c0_14 = arith.constant 0 : index
      %36 = vector.load %arg4[%c0_13, %c0_14] : memref<8x128xf32, #tpu.memory_space<vmem>>, vector<8x128xf32>
      tpu.vector_store %arg4[%c0_13, %c0_14], %35 {strides = array<i32>} : memref<8x128xf32, #tpu.memory_space<vmem>>, vector<8x128xf32>,
      %c1_i32_15 = arith.constant 1 : i32
    } else {
    }
    return
  }
  func.func @transform_0(%arg0: i32, %arg1: i32, %arg2: memref<1xf32, #tpu.memory_space<smem>>) -> (i32, i32) {
    %c1_i32 = arith.constant 1 : i32
    %0 = arith.muli %arg0, %c1_i32 : i32
    %1 = arith.addi %0, %arg1 : i32
    %c0_i32 = arith.constant 0 : i32
    %2 = arith.minsi %1, %c0_i32 : i32
    %c0_i32_0 = arith.constant 0 : i32
    %c0_i32_1 = arith.constant 0 : i32
    return %2, %c0_i32_0 : i32, i32
  }
  func.func @transform_1(%arg0: i32, %arg1: i32, %arg2: memref<1xf32, #tpu.memory_space<smem>>) -> (i32, i32) {
    %c0_i32 = arith.constant 0 : i32
    %c0_i32_0 = arith.constant 0 : i32
    return %arg0, %c0_i32 : i32, i32
  }
}

</mosaic_0001>

<llo_original>
// kernel: tpu_custom_call.1
$region0: #{tpu_custom_call.1}
  #allocation0 [shape = 'u32[]', space=smem, size = 0x4, offset = 0x4, fixed_abs, tag = 'smem constant byte address 0x4 - core index']
  #allocation1 [shape = 'u32[72,128]{1,0:T(1,128)}', space=vmem, size = 0x9000, scoped, tag = 'internal scratch']
  #allocation2 [shape = 's32[1]{0}', space=sflag, size = 0x4, scoped, tag = 'scoped memory for tpu_custom_call.1']
  #allocation3 [shape = 'f32[1]{0:T(128)S(6)}', space=smem, size = 0x200, scoped, tag = 'prefetched SMEM operand 0']
  %s0 = inlined_call_operand.<no memory space> [shape: f32[1], index: 0, kind: input, shape index: {}]
  %s1 = inlined_call_operand.hbm [shape: f32[16,128], index: 1, kind: input, shape index: {}]
  %s2 = inlined_call_operand.hbm [shape: f32[8,128], index: 2, kind: output, shape index: {}]
  %s3 = sld [smem:[#allocation0]]
  $region30: #{tpu_custom_call.1} parent=0
    _
  %s5 = ssub.s32 1, %s3
  %s6 = scalar_select 0, %s5, %s3
  %7 = sst [smem:[#allocation3]] %s0
  $region1: #{tpu_custom_call.1} parent=0
    #allocation4 [shape = 'u8[8192]{0}', space=vmem, size = 0x2000, scoped, tag = 'input window, operand 1, single buffered']
    #allocation5 [shape = 's32[1]{0}', space=sflag, size = 0x4, scoped, tag = 'scoped memory for tpu_custom_call.1']
    #allocation6 [shape = 's32[1]{0}', space=sflag, size = 0x4, scoped, tag = 'scoped memory for tpu_custom_call.1']
    #allocation7 [shape = 'u8[4096]{0}', space=vmem, size = 0x1000, scoped, tag = 'output window, operand 0, single buffered']
    %8 = vsyncpa [#allocation5], 0
    %9 = vsyncpa [#allocation6], 0
    // Predicated region
    $region2: #{tpu_custom_call.1} parent=1 // pred_check
      _
    $region3: #{tpu_custom_call.1} parent=1 // pred_check_branch
      %11 = sbr.rel (0) target = $region5
    $region4: #{tpu_custom_call.1} parent=1 // pred_region
      %s12 = sadd.s32 0, 0
      %p13 = scmp.lt.s32.totalorder %s12, 0
      %s14 = scalar_select %p13, %s12, 0
      %s15 = smul.u32 2, %s14
      %17 = vsyncadd [#allocation5], 0
      %s18 = smul.addr %s15, 8
      %s19 = scalar_lea.hbm %s1, %s18
      %s20 = sshll.u32 %s19, 4
      %s21 = int_to_ptr.hbm [resolvable:$true] %s20
      %s22 = sshll.u32 [#allocation4], 4
      %s23 = int_to_ptr.vmem [resolvable:$true] %s22
      %28 = dma.hbm_to_vmem [thread:$0]  %s21, 256, %s23, [#allocation5], 128, 128, 8
    $region5: #{tpu_custom_call.1} parent=1 // pred_fallthru
      _
    // Predicated region
    $region6: #{tpu_custom_call.1} parent=1 // pred_check
      _
    $region7: #{tpu_custom_call.1} parent=1 // pred_check_branch
      %30 = sbr.rel (0) target = $region9
    $region8: #{tpu_custom_call.1} parent=1 // pred_region
      %32 = dma.done [#allocation5], 256
    $region9: #{tpu_custom_call.1} parent=1 // pred_fallthru
      _
    %s33 = sadd.s32 0, 0
    %p34 = scmp.lt.s32.totalorder %s33, 0
    %s35 = scalar_select %p34, %s33, 0
    %s36 = smul.u32 2, %s35
    %p37 = scmp.eq.s32.totalorder 0, 0
    // Predicated region
    $region10: #{tpu_custom_call.1} parent=1 // pred_check
      %p38 = pneg %p37
    $region11: #{tpu_custom_call.1} parent=1 // pred_check_branch
      %40 = sbr.rel (%p38) target = $region13
    $region12: #{tpu_custom_call.1} parent=1 // pred_region
      %41 = vst [vmem:[#allocation7] sm:$0xff] 0.0
    $region13: #{tpu_custom_call.1} parent=1 // pred_fallthru
      _
    %s42 = sld [smem:[#allocation3]]
    %s43 = sadd.s32 0, 0
    %s44 = smul.u32 %s43, 16
    %s45 = sadd.s32 %s44, 16
    %p46 = scmp.le.s32.totalorder %s45, 16
    %p47 = scmp.lt.s32.totalorder %s44, 16
    // Predicated region
    $region14: #{tpu_custom_call.1} parent=1 // pred_check
      %p48 = pneg %p46
    $region15: #{tpu_custom_call.1} parent=1 // pred_check_branch
      %50 = sbr.rel (%p48) target = $region17
    $region16: #{tpu_custom_call.1} parent=1 // pred_region
      %v51 = vld [vmem:[#allocation4] sm:$0xff]
      %v52 = vld [vmem:[#allocation4 + $0x8] sm:$0xff]
      %v53 = vld [vmem:[#allocation7] sm:$0xff]
      %v54 = vand.u32 2147483647, %v51
      %v55 = vand.u32 2147483647, %v52
      %v56 = vstv %s42
      %v57 = vmul.f32 %v56, %v54
      %v58 = vmul.f32 %v56, %v55
      %v59 = vtanh.pop %v57
      %v60 = vtanh.pop %v58
      %v61 = vadd.f32 %v59, %v60
      %v62 = vadd.f32 %v53, %v61
      %63 = vst [vmem:[#allocation7] sm:$0xff] %v62
    $region17: #{tpu_custom_call.1} parent=1 // pred_fallthru
      _
    %p64 = scmp.gt.s32.totalorder %s45, 16
    %p65 = pnand %p64, %p47
    %p66 = pneg %p65
    // Predicated region
    $region18: #{tpu_custom_call.1} parent=1 // pred_check
      _
    $region19: #{tpu_custom_call.1} parent=1 // pred_check_branch
      %68 = sbr.rel (%p65) target = $region21
    $region20: #{tpu_custom_call.1} parent=1 // pred_region
      %v69 = vld [vmem:[#allocation4] sm:$0xff]
      %v70 = vld [vmem:[#allocation4 + $0x8] sm:$0xff]
      %v71 = vand.u32 2147483647, %v69
      %v72 = vand.u32 2147483647, %v70
      %v73 = vstv %s42
      %v74 = vmul.f32 %v73, %v71
      %v75 = vmul.f32 %v73, %v72
      %v76 = vtanh.pop %v74
      %v77 = vtanh.pop %v75
      %v78 = vlaneseq
      %v79 = vshrl.u32 %v78, 7
      %v80 = vadd.s32 %v79, 8
      %s81 = sadd.s32 %s44, 0
      %v82 = vstv %s81
      %v83 = vadd.s32 %v82, %v79
      %v84 = vadd.s32 %v82, %v80
      %vm85 = vcmp.lt.s32.totalorder %v83, 16
      %vm86 = vcmp.lt.s32.totalorder %v84, 16
      %v87 = vsel %vm85, %v76, 0.0
      %v88 = vsel %vm86, %v77, 0.0
      %v89 = vld [vmem:[#allocation7] sm:$0xff]
      %v90 = vadd.f32 %v87, %v88
      %v91 = vadd.f32 %v89, %v90
      %92 = vst [vmem:[#allocation7] sm:$0xff] %v91
    $region21: #{tpu_custom_call.1} parent=1 // pred_fallthru
      _
    // Predicated region
    $region22: #{tpu_custom_call.1} parent=1 // pred_check
      _
    $region23: #{tpu_custom_call.1} parent=1 // pred_check_branch
      %94 = sbr.rel (0) target = $region25
    $region24: #{tpu_custom_call.1} parent=1 // pred_region
      %96 = vsyncadd [#allocation6], 0
      %s98 = sshll.u32 [#allocation7], 4
      %s99 = int_to_ptr.vmem [resolvable:$true] %s98
      %s100 = sshll.u32 %s2, 4
      %s101 = int_to_ptr.hbm [resolvable:$true] %s100
      %103 = dma.vmem_to_hbm [thread:$0]  %s99, 128, %s101, [#allocation6]
    $region25: #{tpu_custom_call.1} parent=1 // pred_fallthru
      _
    // Predicated region
    $region26: #{tpu_custom_call.1} parent=1 // pred_check
      _
    $region27: #{tpu_custom_call.1} parent=1 // pred_check_branch
      %105 = sbr.rel (0) target = $region29
    $region28: #{tpu_custom_call.1} parent=1 // pred_region
      %107 = dma.done [#allocation6], 128
    $region29: #{tpu_custom_call.1} parent=1 // pred_fallthru
      _
    %108 = vsyncpa [#allocation5], 1
    %109 = vsyncpa [#allocation6], 1

</llo_original>
